<compile_context>
chip_gen: v5e
topology: v5e:2x2
jax: 0.10.0
libtpu: 0.0.40
codegen_flags: <defaults>
</compile_context>

<pallas_src>
import jax
import jax.numpy as jnp
import numpy as np
from jax.experimental import pallas as pl
from jax.experimental.pallas import tpu as pltpu

# ---- DetectionLossConfig (deterministic, set in-script) --------------------
HEATMAP_LOSS_WEIGHT = 100.0
OFFSET_LOSS_WEIGHT = 10.0
SIZE_LOSS_WEIGHT = 1.0
HEADING_LOSS_WEIGHT = 100.0
HEATMAP_THRESHOLD = 0.01
HEATMAP_NORM_SCALE = 20.0  # unused in forward, kept for config parity

# focal_loss defaults (called with default args in forward)
FOCAL_ALPHA = 2.0
FOCAL_GAMMA = 4.0

_LANES = 128
_MAX_BLOCK_SUBLANES = 1024          # ~3.5 MiB per f32 (7, SL, 128) input block
_VMEM_LIMIT_BYTES = 40 * 1024 * 1024  # 2 inputs x 2 bufs x 3.5 MiB + temps << 40 MiB


def _make_kernel(l_valid, sl, fold_sl, num_tiles):
    """Per-(batch, spatial-tile) kernel body.

    Each grid step writes a (5, fold_sl, 128) partial:
      [0] sum of elementwise BCE-with-logits(sigmoid(pred_hm), target_hm)
      [1] count of elements with int(target_hm) == 0      (for sum/max of `at`)
      [2] sum of offset  pair-MSE * masked heatmap weight
      [3] sum of size    pair-MSE * masked heatmap weight
      [4] sum of heading pair-MSE * masked heatmap weight
    Out-of-bounds data in the (ragged) last tile is zeroed via a validity mask.
    """
    needs_mask = (num_tiles * sl * _LANES) != l_valid
    groups = sl // fold_sl  # == 1 when sl == fold_sl (tiny-rows case)

    def fold(q):  # (sl, 128) -> (fold_sl, 128), pure VPU vreg adds
        if groups == 1:
            return q
        return jnp.sum(q.reshape(groups, fold_sl, _LANES), axis=0)

    def kernel(pred_ref, targ_ref, out_ref):
        t = pl.program_id(1)

        if needs_mask:  # static: only emitted when the last tile is ragged
            row = jax.lax.broadcasted_iota(jnp.int32, (sl, _LANES), 0)
            lane = jax.lax.broadcasted_iota(jnp.int32, (sl, _LANES), 1)
            valid = (t * sl + row) * _LANES + lane < l_valid

            def mask(q):
                return jnp.where(valid, q, 0.0)
        else:
            def mask(q):
                return q

        t_heat = targ_ref[0, 0].astype(jnp.float32)          # (sl, 128)
        # Faithful to the reference: BCE-with-logits applied to sigmoid(pred)
        # (effectively a double sigmoid, as in the original PyTorch code).
        x = jax.nn.sigmoid(pred_ref[0, 0].astype(jnp.float32))
        # x in (0, 1) -> max(x, 0) == x and |x| == x; log1p for stability.
        bce = x - x * t_heat + jnp.log1p(jnp.exp(-x))
        zeros_cnt = (t_heat.astype(jnp.int32) == 0).astype(jnp.float32)
        w = jnp.where(t_heat > HEATMAP_THRESHOLD, t_heat, 0.0)

        out_ref[0, 0, 0] = fold(mask(bce))
        out_ref[0, 0, 1] = fold(mask(zeros_cnt))

        def pair_wmse(c):
            # Just-in-time per-channel loads keep peak liveness ~2 channel tiles.
            d0 = pred_ref[0, c].astype(jnp.float32) - targ_ref[0, c].astype(jnp.float32)
            d1 = pred_ref[0, c + 1].astype(jnp.float32) - targ_ref[0, c + 1].astype(jnp.float32)
            # Mask the full contribution so garbage in the ragged tail cannot
            # leak through (even as inf * 0 -> NaN).
            return fold(mask((d0 * d0 + d1 * d1) * w))

        out_ref[0, 0, 2] = pair_wmse(1)  # offsets  (channels 1, 2)
        out_ref[0, 0, 3] = pair_wmse(3)  # sizes    (channels 3, 4)
        out_ref[0, 0, 4] = pair_wmse(5)  # headings (channels 5, 6)

    return kernel


def detection_loss(predictions, targets):
    """JAX/Pallas equivalent of DetectionLossFunction.forward.

    Returns (total_loss, (heatmap_loss, offset_loss, size_loss, heading_loss)).
    Inputs may be f32 or bf16 (kernel upcasts; feeding bf16 halves HBM traffic).
    """
    B, C, H, W = predictions.shape
    assert C == 7 and targets.shape == predictions.shape

    L = H * W
    rows = -(-L // _LANES)  # ceil(L / 128)

    def to_tiles(x):
        x = x.reshape(B, C, L)  # contiguous reshape (free)
        if rows * _LANES != L:
            # TODO(synk): minimal lane pad (one full copy) only when H*W is not a
            # multiple of 128; unavoidable with the lane-dense (rows, 128) layout.
            x = jnp.pad(x, ((0, 0), (0, 0), (0, rows * _LANES - L)))
        return x.reshape(B, C, rows, _LANES)

    pred_t = to_tiles(predictions)
    targ_t = to_tiles(targets)

    if rows >= 8:
        sl = min(_MAX_BLOCK_SUBLANES, (rows // 8) * 8)  # multiple of 8, <= rows
        fold_sl = 8
    else:
        sl = rows          # block equals full dim -> allowed block shape
        fold_sl = rows
    num_tiles = -(-rows // sl)

    kernel = _make_kernel(L, sl, fold_sl, num_tiles)

    partials = pl.pallas_call(
        kernel,
        out_shape=jax.ShapeDtypeStruct((B, num_tiles, 5, fold_sl, _LANES),
                                       jnp.float32),
        grid=(B, num_tiles),
        in_specs=[
            pl.BlockSpec((1, C, sl, _LANES), lambda b, t: (b, 0, t, 0)),
            pl.BlockSpec((1, C, sl, _LANES), lambda b, t: (b, 0, t, 0)),
        ],
        out_specs=pl.BlockSpec((1, 1, 5, fold_sl, _LANES),
                               lambda b, t: (b, t, 0, 0, 0)),
        compiler_params=pltpu.CompilerParams(
            dimension_semantics=("parallel", "parallel"),
            vmem_limit_bytes=_VMEM_LIMIT_BYTES),
    )(pred_t, targ_t)

    sums = jnp.sum(partials, axis=(0, 1, 3, 4))  # (5,)
    bce_sum, n0, off_sum, size_sum, head_sum = (sums[i] for i in range(5))

    n = jnp.float32(B * L)  # heatmap has one channel -> B*H*W elements

    # focal_loss finalisation (scalar glue; matches torch semantics):
    #   BCE_loss = mean-reduced scalar, pt = exp(-BCE),
    #   focal_i = at_i * (1-pt)^gamma * BCE, normalised by max(focal), then mean.
    bce_mean = bce_sum / n
    pt = jnp.exp(-bce_mean)
    c = (1.0 - pt) ** FOCAL_GAMMA * bce_mean  # scalar, >= 0

    a0 = jnp.float32(FOCAL_ALPHA)
    a1 = jnp.float32(1.0 - FOCAL_ALPHA)
    sum_at = a0 * n0 + a1 * (n - n0)
    a_hi = jnp.float32(max(FOCAL_ALPHA, 1.0 - FOCAL_ALPHA))
    max_at = jnp.where(n0 > 0, jnp.where(n0 < n, a_hi, a0), a1)

    # Keep `c` in numerator and denominator so the NaN behaviour when
    # bce_mean == 0 matches the PyTorch reference exactly.
    heatmap_loss = (sum_at * c) / (max_at * c) / n

    offset_loss = off_sum / n
    size_loss = size_sum / n
    heading_loss = head_sum / n

    total_loss = (
        heatmap_loss * HEATMAP_LOSS_WEIGHT
        + offset_loss * OFFSET_LOSS_WEIGHT
        + size_loss * SIZE_LOSS_WEIGHT
        + heading_loss * HEADING_LOSS_WEIGHT
    )
    return total_loss, (heatmap_loss, offset_loss, size_loss, heading_loss)


# ---------------------------------------------------------------------------
# Pure-JAX reference (literal transcription of the PyTorch module) for checking
# ---------------------------------------------------------------------------
def reference_loss(predictions, targets):
    predictions = predictions.astype(jnp.float32)
    targets = targets.astype(jnp.float32)

    t_heat = targets[:, 0:1]
    p_heat = jax.nn.sigmoid(predictions[:, 0:1])

    # focal_loss(target_heatmap, predicted_heatmap)
    bce = jnp.mean(
        jnp.maximum(p_heat, 0.0)
        - p_heat * t_heat
        + jnp.log(1.0 + jnp.exp(-jnp.abs(p_heat)))
    )
    at = jnp.where(
        t_heat.astype(jnp.int32).reshape(-1) == 0, FOCAL_ALPHA, 1.0 - FOCAL_ALPHA
    )
    pt = jnp.exp(-bce)
    fl = at * (1.0 - pt) ** FOCAL_GAMMA * bce
    heatmap_loss = jnp.mean(fl / jnp.max(fl))

    w = (jnp.where(t_heat > HEATMAP_THRESHOLD, 1.0, 0.0) * t_heat)[:, 0]  # [B,H,W]

    def wmse(c0):
        mse = jnp.sum((predictions[:, c0:c0 + 2] - targets[:, c0:c0 + 2]) ** 2, axis=1)
        return jnp.mean(mse * w)

    offset_loss = wmse(1)
    size_loss = wmse(3)
    heading_loss = wmse(5)

    total = (
        heatmap_loss * HEATMAP_LOSS_WEIGHT
        + offset_loss * OFFSET_LOSS_WEIGHT
        + size_loss * SIZE_LOSS_WEIGHT
        + heading_loss * HEADING_LOSS_WEIGHT
    )
    return total, (heatmap_loss, offset_loss, size_loss, heading_loss)


def _check(shape, key):
    B, C, H, W = shape
    k1, k2, k3 = jax.random.split(key, 3)
    predictions = jax.random.normal(k1, (B, C, H, W), dtype=jnp.float32)
    target_heat = jax.random.uniform(k2, (B, 1, H, W), dtype=jnp.float32)
    target_rest = jax.random.normal(k3, (B, 6, H, W), dtype=jnp.float32)
    targets = jnp.concatenate([target_heat, target_rest], axis=1)

    total, parts = jax.block_until_ready(detection_loss(predictions, targets))
    ref_total, ref_parts = jax.block_until_ready(reference_loss(predictions, targets))

    np.testing.assert_allclose(
        np.asarray(total), np.asarray(ref_total), rtol=1e-4, atol=1e-5
    )
    np.testing.assert_allclose(
        np.asarray(jnp.stack(parts)), np.asarray(jnp.stack(ref_parts)),
        rtol=1e-4, atol=1e-5,
    )


if __name__ == "__main__":
    key = jax.random.PRNGKey(0)
    k_a, k_b = jax.random.split(key)

    # Small canonical shape (rows < 8 path, lane-aligned).
    _check((2, 7, 16, 16), k_a)
    # Ragged path: H*W not a multiple of 128 and of the spatial tile
    # (exercises the in-kernel validity mask on a partial last block).
    _check((2, 7, 40, 40), k_b)

    print("KERNEL_OK")
</pallas_src>

<mosaic_0001>
module attributes {stable_mosaic.version = 11 : i64} {
  func.func @kernel(%arg0: i32, %arg1: i32, %arg2: memref<1x7x2x128xf32, #tpu.memory_space<vmem>>, %arg3: memref<1x7x2x128xf32, #tpu.memory_space<vmem>>, %arg4: memref<1x1x5x2x128xf32, #tpu.memory_space<vmem>>) attributes {dimension_semantics = [#tpu.dimension_semantics<parallel>, #tpu.dimension_semantics<parallel>], iteration_bounds = array<i64: 2, 1>, scalar_prefetch = 0 : i64, scratch_operands = 0 : i64, tpu.core_type = #tpu.core_type<tc>, window_params = [{transform_indices = @transform_0, window_bounds = array<i64: 1, 7, 2, 128>}, {transform_indices = @transform_1, window_bounds = array<i64: 1, 7, 2, 128>}, {transform_indices = @transform_2, window_bounds = array<i64: 1, 1, 5, 2, 128>}]} {
    %c0 = arith.constant 0 : index
    %c0_0 = arith.constant 0 : index
    %c0_1 = arith.constant 0 : index
    %c0_2 = arith.constant 0 : index
    %0 = vector.load %arg3[%c0, %c0_0, %c0_1, %c0_2] : memref<1x7x2x128xf32, #tpu.memory_space<vmem>>, vector<1x1x2x128xf32>
    %1 = vector.shape_cast %0 : vector<1x1x2x128xf32> to vector<2x128xf32>
    %c0_3 = arith.constant 0 : index
    %c0_4 = arith.constant 0 : index
    %c0_5 = arith.constant 0 : index
    %c0_6 = arith.constant 0 : index
    %2 = vector.load %arg2[%c0_3, %c0_4, %c0_5, %c0_6] : memref<1x7x2x128xf32, #tpu.memory_space<vmem>>, vector<1x1x2x128xf32>
    %3 = vector.shape_cast %2 : vector<1x1x2x128xf32> to vector<2x128xf32>
    %4 = arith.negf %3 : vector<2x128xf32>
    %5 = math.exp %4 : vector<2x128xf32>
    %cst = arith.constant 1.000000e+00 : f32
    %6 = vector.broadcast %cst : f32 to vector<2x128xf32>
    %7 = arith.addf %6, %5 : vector<2x128xf32>
    %8 = arith.divf %6, %7 : vector<2x128xf32>
    %9 = arith.mulf %8, %1 : vector<2x128xf32>
    %10 = arith.subf %8, %9 : vector<2x128xf32>
    %cst_7 = arith.constant 0.000000e+00 : f32
    %11 = vector.broadcast %cst_7 : f32 to vector<2x128xf32>
    %12 = arith.subf %11, %8 : vector<2x128xf32>
    %13 = math.exp %12 : vector<2x128xf32>
    %14 = math.log1p %13 : vector<2x128xf32>
    %15 = arith.addf %10, %14 : vector<2x128xf32>
    %16 = arith.fptosi %1 : vector<2x128xf32> to vector<2x128xi32>
    %c0_i32 = arith.constant 0 : i32
    %17 = vector.broadcast %c0_i32 : i32 to vector<2x128xi32>
    %18 = arith.cmpi eq, %16, %17 : vector<2x128xi32>
    %19 = arith.extui %18 : vector<2x128xi1> to vector<2x128xi32>
    %20 = arith.sitofp %19 : vector<2x128xi32> to vector<2x128xf32>
    %cst_8 = arith.constant 0.00999999977 : f32
    %21 = vector.broadcast %cst_8 : f32 to vector<2x128xf32>
    %22 = arith.cmpf ogt, %1, %21 : vector<2x128xf32>
    %cst_9 = arith.constant 0.000000e+00 : f32
    %23 = vector.broadcast %cst_9 : f32 to vector<2x128xf32>
    %24 = arith.select %22, %1, %23 : vector<2x128xi1>, vector<2x128xf32>
    %c0_10 = arith.constant 0 : index
    %c0_11 = arith.constant 0 : index
    %c0_12 = arith.constant 0 : index
    %c0_13 = arith.constant 0 : index
    %c0_14 = arith.constant 0 : index
    %25 = vector.load %arg4[%c0_10, %c0_11, %c0_12, %c0_13, %c0_14] : memref<1x1x5x2x128xf32, #tpu.memory_space<vmem>>, vector<1x1x1x2x128xf32>
    %26 = vector.shape_cast %25 : vector<1x1x1x2x128xf32> to vector<2x128xf32>
    %27 = vector.shape_cast %15 : vector<2x128xf32> to vector<1x1x1x2x128xf32>
    tpu.vector_store %arg4[%c0_10, %c0_11, %c0_12, %c0_13, %c0_14], %27 {strides = array<i32>} : memref<1x1x5x2x128xf32, #tpu.memory_space<vmem>>, vector<1x1x1x2x128xf32>,
    %c0_15 = arith.constant 0 : index
    %c0_16 = arith.constant 0 : index
    %c1 = arith.constant 1 : index
    %c0_17 = arith.constant 0 : index
    %c0_18 = arith.constant 0 : index
    %28 = vector.load %arg4[%c0_15, %c0_16, %c1, %c0_17, %c0_18] : memref<1x1x5x2x128xf32, #tpu.memory_space<vmem>>, vector<1x1x1x2x128xf32>
    %29 = vector.shape_cast %28 : vector<1x1x1x2x128xf32> to vector<2x128xf32>
    %30 = vector.shape_cast %20 : vector<2x128xf32> to vector<1x1x1x2x128xf32>
    tpu.vector_store %arg4[%c0_15, %c0_16, %c1, %c0_17, %c0_18], %30 {strides = array<i32>} : memref<1x1x5x2x128xf32, #tpu.memory_space<vmem>>, vector<1x1x1x2x128xf32>,
    %c0_19 = arith.constant 0 : index
    %c1_20 = arith.constant 1 : index
    %c0_21 = arith.constant 0 : index
    %c0_22 = arith.constant 0 : index
    %31 = vector.load %arg2[%c0_19, %c1_20, %c0_21, %c0_22] : memref<1x7x2x128xf32, #tpu.memory_space<vmem>>, vector<1x1x2x128xf32>
    %32 = vector.shape_cast %31 : vector<1x1x2x128xf32> to vector<2x128xf32>
    %c0_23 = arith.constant 0 : index
    %c1_24 = arith.constant 1 : index
    %c0_25 = arith.constant 0 : index
    %c0_26 = arith.constant 0 : index
    %33 = vector.load %arg3[%c0_23, %c1_24, %c0_25, %c0_26] : memref<1x7x2x128xf32, #tpu.memory_space<vmem>>, vector<1x1x2x128xf32>
    %34 = vector.shape_cast %33 : vector<1x1x2x128xf32> to vector<2x128xf32>
    %35 = arith.subf %32, %34 : vector<2x128xf32>
    %c0_27 = arith.constant 0 : index
    %c2 = arith.constant 2 : index
    %c0_28 = arith.constant 0 : index
    %c0_29 = arith.constant 0 : index
    %36 = vector.load %arg2[%c0_27, %c2, %c0_28, %c0_29] : memref<1x7x2x128xf32, #tpu.memory_space<vmem>>, vector<1x1x2x128xf32>
    %37 = vector.shape_cast %36 : vector<1x1x2x128xf32> to vector<2x128xf32>
    %c0_30 = arith.constant 0 : index
    %c2_31 = arith.constant 2 : index
    %c0_32 = arith.constant 0 : index
    %c0_33 = arith.constant 0 : index
    %38 = vector.load %arg3[%c0_30, %c2_31, %c0_32, %c0_33] : memref<1x7x2x128xf32, #tpu.memory_space<vmem>>, vector<1x1x2x128xf32>
    %39 = vector.shape_cast %38 : vector<1x1x2x128xf32> to vector<2x128xf32>
    %40 = arith.subf %37, %39 : vector<2x128xf32>
    %41 = arith.mulf %35, %35 : vector<2x128xf32>
    %42 = arith.mulf %40, %40 : vector<2x128xf32>
    %43 = arith.addf %41, %42 : vector<2x128xf32>
    %44 = arith.mulf %43, %24 : vector<2x128xf32>
    %c0_34 = arith.constant 0 : index
    %c0_35 = arith.constant 0 : index
    %c2_36 = arith.constant 2 : index
    %c0_37 = arith.constant 0 : index
    %c0_38 = arith.constant 0 : index
    %45 = vector.load %arg4[%c0_34, %c0_35, %c2_36, %c0_37, %c0_38] : memref<1x1x5x2x128xf32, #tpu.memory_space<vmem>>, vector<1x1x1x2x128xf32>
    %46 = vector.shape_cast %45 : vector<1x1x1x2x128xf32> to vector<2x128xf32>
    %47 = vector.shape_cast %44 : vector<2x128xf32> to vector<1x1x1x2x128xf32>
    tpu.vector_store %arg4[%c0_34, %c0_35, %c2_36, %c0_37, %c0_38], %47 {strides = array<i32>} : memref<1x1x5x2x128xf32, #tpu.memory_space<vmem>>, vector<1x1x1x2x128xf32>,
    %c0_39 = arith.constant 0 : index
    %c3 = arith.constant 3 : index
    %c0_40 = arith.constant 0 : index
    %c0_41 = arith.constant 0 : index
    %48 = vector.load %arg2[%c0_39, %c3, %c0_40, %c0_41] : memref<1x7x2x128xf32, #tpu.memory_space<vmem>>, vector<1x1x2x128xf32>
    %49 = vector.shape_cast %48 : vector<1x1x2x128xf32> to vector<2x128xf32>
    %c0_42 = arith.constant 0 : index
    %c3_43 = arith.constant 3 : index
    %c0_44 = arith.constant 0 : index
    %c0_45 = arith.constant 0 : index
    %50 = vector.load %arg3[%c0_42, %c3_43, %c0_44, %c0_45] : memref<1x7x2x128xf32, #tpu.memory_space<vmem>>, vector<1x1x2x128xf32>
    %51 = vector.shape_cast %50 : vector<1x1x2x128xf32> to vector<2x128xf32>
    %52 = arith.subf %49, %51 : vector<2x128xf32>
    %c0_46 = arith.constant 0 : index
    %c4 = arith.constant 4 : index
    %c0_47 = arith.constant 0 : index
    %c0_48 = arith.constant 0 : index
    %53 = vector.load %arg2[%c0_46, %c4, %c0_47, %c0_48] : memref<1x7x2x128xf32, #tpu.memory_space<vmem>>, vector<1x1x2x128xf32>
    %54 = vector.shape_cast %53 : vector<1x1x2x128xf32> to vector<2x128xf32>
    %c0_49 = arith.constant 0 : index
    %c4_50 = arith.constant 4 : index
    %c0_51 = arith.constant 0 : index
    %c0_52 = arith.constant 0 : index
    %55 = vector.load %arg3[%c0_49, %c4_50, %c0_51, %c0_52] : memref<1x7x2x128xf32, #tpu.memory_space<vmem>>, vector<1x1x2x128xf32>
    %56 = vector.shape_cast %55 : vector<1x1x2x128xf32> to vector<2x128xf32>
    %57 = arith.subf %54, %56 : vector<2x128xf32>
    %58 = arith.mulf %52, %52 : vector<2x128xf32>
    %59 = arith.mulf %57, %57 : vector<2x128xf32>
    %60 = arith.addf %58, %59 : vector<2x128xf32>
    %61 = arith.mulf %60, %24 : vector<2x128xf32>
    %c0_53 = arith.constant 0 : index
    %c0_54 = arith.constant 0 : index
    %c3_55 = arith.constant 3 : index
    %c0_56 = arith.constant 0 : index
    %c0_57 = arith.constant 0 : index
    %62 = vector.load %arg4[%c0_53, %c0_54, %c3_55, %c0_56, %c0_57] : memref<1x1x5x2x128xf32, #tpu.memory_space<vmem>>, vector<1x1x1x2x128xf32>
    %63 = vector.shape_cast %62 : vector<1x1x1x2x128xf32> to vector<2x128xf32>
    %64 = vector.shape_cast %61 : vector<2x128xf32> to vector<1x1x1x2x128xf32>
    tpu.vector_store %arg4[%c0_53, %c0_54, %c3_55, %c0_56, %c0_57], %64 {strides = array<i32>} : memref<1x1x5x2x128xf32, #tpu.memory_space<vmem>>, vector<1x1x1x2x128xf32>,
    %c0_58 = arith.constant 0 : index
    %c5 = arith.constant 5 : index
    %c0_59 = arith.constant 0 : index
    %c0_60 = arith.constant 0 : index
    %65 = vector.load %arg2[%c0_58, %c5, %c0_59, %c0_60] : memref<1x7x2x128xf32, #tpu.memory_space<vmem>>, vector<1x1x2x128xf32>
    %66 = vector.shape_cast %65 : vector<1x1x2x128xf32> to vector<2x128xf32>
    %c0_61 = arith.constant 0 : index
    %c5_62 = arith.constant 5 : index
    %c0_63 = arith.constant 0 : index
    %c0_64 = arith.constant 0 : index
    %67 = vector.load %arg3[%c0_61, %c5_62, %c0_63, %c0_64] : memref<1x7x2x128xf32, #tpu.memory_space<vmem>>, vector<1x1x2x128xf32>
    %68 = vector.shape_cast %67 : vector<1x1x2x128xf32> to vector<2x128xf32>
    %69 = arith.subf %66, %68 : vector<2x128xf32>
    %c0_65 = arith.constant 0 : index
    %c6 = arith.constant 6 : index
    %c0_66 = arith.constant 0 : index
    %c0_67 = arith.constant 0 : index
    %70 = vector.load %arg2[%c0_65, %c6, %c0_66, %c0_67] : memref<1x7x2x128xf32, #tpu.memory_space<vmem>>, vector<1x1x2x128xf32>
    %71 = vector.shape_cast %70 : vector<1x1x2x128xf32> to vector<2x128xf32>
    %c0_68 = arith.constant 0 : index
    %c6_69 = arith.constant 6 : index
    %c0_70 = arith.constant 0 : index
    %c0_71 = arith.constant 0 : index
    %72 = vector.load %arg3[%c0_68, %c6_69, %c0_70, %c0_71] : memref<1x7x2x128xf32, #tpu.memory_space<vmem>>, vector<1x1x2x128xf32>
    %73 = vector.shape_cast %72 : vector<1x1x2x128xf32> to vector<2x128xf32>
    %74 = arith.subf %71, %73 : vector<2x128xf32>
    %75 = arith.mulf %69, %69 : vector<2x128xf32>
    %76 = arith.mulf %74, %74 : vector<2x128xf32>
    %77 = arith.addf %75, %76 : vector<2x128xf32>
    %78 = arith.mulf %77, %24 : vector<2x128xf32>
    %c0_72 = arith.constant 0 : index
    %c0_73 = arith.constant 0 : index
    %c4_74 = arith.constant 4 : index
    %c0_75 = arith.constant 0 : index
    %c0_76 = arith.constant 0 : index
    %79 = vector.load %arg4[%c0_72, %c0_73, %c4_74, %c0_75, %c0_76] : memref<1x1x5x2x128xf32, #tpu.memory_space<vmem>>, vector<1x1x1x2x128xf32>
    %80 = vector.shape_cast %79 : vector<1x1x1x2x128xf32> to vector<2x128xf32>
    %81 = vector.shape_cast %78 : vector<2x128xf32> to vector<1x1x1x2x128xf32>
    tpu.vector_store %arg4[%c0_72, %c0_73, %c4_74, %c0_75, %c0_76], %81 {strides = array<i32>} : memref<1x1x5x2x128xf32, #tpu.memory_space<vmem>>, vector<1x1x1x2x128xf32>,
    return
  }
  func.func @transform_0(%arg0: i32, %arg1: i32) -> (i32, i32, i32, i32) {
    %c0_i32 = arith.constant 0 : i32
    %c0_i32_0 = arith.constant 0 : i32
    %c0_i32_1 = arith.constant 0 : i32
    return %arg0, %c0_i32, %arg1, %c0_i32_0 : i32, i32, i32, i32
  }
  func.func @transform_1(%arg0: i32, %arg1: i32) -> (i32, i32, i32, i32) {
    %c0_i32 = arith.constant 0 : i32
    %c0_i32_0 = arith.constant 0 : i32
    %c0_i32_1 = arith.constant 0 : i32
    return %arg0, %c0_i32, %arg1, %c0_i32_0 : i32, i32, i32, i32
  }
  func.func @transform_2(%arg0: i32, %arg1: i32) -> (i32, i32, i32, i32, i32) {
    %c0_i32 = arith.constant 0 : i32
    %c0_i32_0 = arith.constant 0 : i32
    %c0_i32_1 = arith.constant 0 : i32
    %c0_i32_2 = arith.constant 0 : i32
    return %arg0, %arg1, %c0_i32, %c0_i32_0, %c0_i32_1 : i32, i32, i32, i32, i32
  }
}

</mosaic_0001>

<llo_original>
// kernel: tpu_custom_call.1
$region0: #{tpu_custom_call.1}
  #allocation0 [shape = 'u32[]', space=smem, size = 0x4, offset = 0x4, fixed_abs, tag = 'smem constant byte address 0x4 - core index']
  #allocation1 [shape = 'u32[72,128]{1,0:T(1,128)}', space=vmem, size = 0x9000, scoped, tag = 'internal scratch']
  %s0 = inlined_call_operand.hbm [shape: f32[2,7,2,128], index: 0, kind: input, shape index: {}]
  %s1 = inlined_call_operand.hbm [shape: f32[2,7,2,128], index: 1, kind: input, shape index: {}]
  %s2 = inlined_call_operand.hbm [shape: f32[2,1,5,2,128], index: 2, kind: output, shape index: {}]
  %s3 = sld [smem:[#allocation0]]
  $region49: #{tpu_custom_call.1} parent=0
    _
  %s5 = ssub.s32 1, %s3
  %s6 = scalar_select 0, %s5, %s3
  $region1: #{tpu_custom_call.1} parent=0
    #allocation2 [shape = 'u8[14336]{0}', space=vmem, size = 0x3800, scoped, tag = 'input window, operand 0']
    #allocation3 [shape = 's32[2]{0}', space=sflag, size = 0x8, scoped, tag = 'scoped memory for tpu_custom_call.1']
    #allocation4 [shape = 's32[2]{0}', space=sflag, size = 0x8, scoped, tag = 'scoped memory for tpu_custom_call.1']
    #allocation5 [shape = 'u8[14336]{0}', space=vmem, size = 0x3800, scoped, tag = 'input window, operand 1']
    #allocation6 [shape = 's32[2]{0}', space=sflag, size = 0x8, scoped, tag = 'scoped memory for tpu_custom_call.1']
    #allocation7 [shape = 'u8[10240]{0}', space=vmem, size = 0x2800, scoped, tag = 'output window, operand 0']
    %7 = vsyncpa [#allocation3], 0
    %s8 = scalar_lea.sflag [#allocation3], 1
    %9 = vsyncpa %s8, 0
    %10 = vsyncpa [#allocation6], 0
    %s11 = scalar_lea.sflag [#allocation6], 1
    %12 = vsyncpa %s11, 0
    %13 = vsyncpa [#allocation4], 0
    %s14 = scalar_lea.sflag [#allocation4], 1
    %15 = vsyncpa %s14, 0
    loop: start=0, step=1, limit=4
    $region2: #{tpu_custom_call.1} parent=1 // loop_pre_header
      _
    $region3: #{tpu_custom_call.1} parent=1 // loop_header
      %s17 = sphi 0, %s21
      %p18 = scmp.ge.s32.totalorder %s17, 4
      %s24 = sphi 0, %s36
      %s25 = sphi 0, %s32
      %s26 = sphi 0, %s24
      %s27 = sphi 0, %s25
      %s28 = sphi 0, %s26
      %s29 = sphi 0, %s27
      %s41 = sphi 0, %s43
      %s44 = sphi 0, %s41
      %s45 = sphi 0, %s44
      %s61 = sphi 0, %s45
      %s69 = sphi 0, %s71
      %s72 = sphi 0, %s69
      %s73 = sphi 0, %s72
      %s89 = sphi 0, %s73
      %s97 = sphi 0, %s99
      %s100 = sphi 0, %s97
      %s101 = sphi 0, %s100
      %s117 = sphi 0, %s101
    $region4: #{tpu_custom_call.1} parent=1 // loop_header_branch
      %20 = sbr.rel (%p18) target = $region8
    $region5: #{tpu_custom_call.1} parent=1 // loop_body
      %s22 = ssub.s32 %s17, 1
      %s23 = ssub.s32 %s17, 2
      %s30 = sadd.s32 1, %s25
      %p31 = scmp.ge.s32.totalorder %s30, 1
      %s32 = scalar_select %p31, 0, %s30
      %s33 = sadd.s32 1, %s24
      %s34 = scalar_select %p31, %s33, %s24
      %p35 = scmp.ge.s32.totalorder %s34, 2
      %s36 = scalar_select %p35, 0, %s34
      %s37 = ssub.s32 %s24, %s36
      %s38 = ssub.s32 %s25, %s32
      %s39 = sor.u32 %s37, %s38
      %p40 = scmp.eq.s32.totalorder %s39, 0
      %s42 = sadd.s32 %s41, 1
      %s43 = scalar_select %p40, %s41, %s42
      %p46 = pneg %p40
      %p47 = scmp.eq.s32.totalorder %s17, 1
      %p48 = por %p46, %p47
      %p49 = scmp.ne.s32.totalorder %s41, %s44
      %p50 = scmp.eq.s32.totalorder %s17, 0
      %p51 = por %p49, %p50
      %p52 = scmp.ne.s32.totalorder %s41, %s44
      %p53 = scmp.eq.s32.totalorder %s22, 1
      %p54 = por %p52, %p53
      %p55 = scmp.ne.s32.totalorder %s44, %s45
      %p56 = scmp.eq.s32.totalorder %s22, 0
      %p57 = por %p55, %p56
      %p58 = scmp.ne.s32.totalorder %s44, %s45
      %p59 = scmp.eq.s32.totalorder %s23, 1
      %p60 = por %p58, %p59
      %p62 = scmp.ne.s32.totalorder %s45, %s61
      %p63 = scmp.eq.s32.totalorder %s23, 0
      %p64 = por %p62, %p63
      %s65 = ssub.s32 %s24, %s36
      %s66 = ssub.s32 %s25, %s32
      %s67 = sor.u32 %s65, %s66
      %p68 = scmp.eq.s32.totalorder %s67, 0
      %s70 = sadd.s32 %s69, 1
      %s71 = scalar_select %p68, %s69, %s70
      %p74 = pneg %p68
      %p75 = scmp.eq.s32.totalorder %s17, 1
      %p76 = por %p74, %p75
      %p77 = scmp.ne.s32.totalorder %s69, %s72
      %p78 = scmp.eq.s32.totalorder %s17, 0
      %p79 = por %p77, %p78
      %p80 = scmp.ne.s32.totalorder %s69, %s72
      %p81 = scmp.eq.s32.totalorder %s22, 1
      %p82 = por %p80, %p81
      %p83 = scmp.ne.s32.totalorder %s72, %s73
      %p84 = scmp.eq.s32.totalorder %s22, 0
      %p85 = por %p83, %p84
      %p86 = scmp.ne.s32.totalorder %s72, %s73
      %p87 = scmp.eq.s32.totalorder %s23, 1
      %p88 = por %p86, %p87
      %p90 = scmp.ne.s32.totalorder %s73, %s89
      %p91 = scmp.eq.s32.totalorder %s23, 0
      %p92 = por %p90, %p91
      %s93 = ssub.s32 %s24, %s36
      %s94 = ssub.s32 %s25, %s32
      %s95 = sor.u32 %s93, %s94
      %p96 = scmp.eq.s32.totalorder %s95, 0
      %s98 = sadd.s32 %s97, 1
      %s99 = scalar_select %p96, %s97, %s98
      %p102 = pneg %p96
      %p103 = scmp.eq.s32.totalorder %s17, 1
      %p104 = por %p102, %p103
      %p105 = scmp.ne.s32.totalorder %s97, %s100
      %p106 = scmp.eq.s32.totalorder %s17, 0
      %p107 = por %p105, %p106
      %p108 = scmp.ne.s32.totalorder %s97, %s100
      %p109 = scmp.eq.s32.totalorder %s22, 1
      %p110 = por %p108, %p109
      %p111 = scmp.ne.s32.totalorder %s100, %s101
      %p112 = scmp.eq.s32.totalorder %s22, 0
      %p113 = por %p111, %p112
      %p114 = scmp.ne.s32.totalorder %s100, %s101
      %p115 = scmp.eq.s32.totalorder %s23, 1
      %p116 = por %p114, %p115
      %p118 = scmp.ne.s32.totalorder %s101, %s117
      %p119 = scmp.eq.s32.totalorder %s23, 0
      %p120 = por %p118, %p119
      %p121 = scmp.le.s32.totalorder 1, %s17
      %p122 = scmp.lt.s32.totalorder %s17, 3
      %p123 = pnand %p121, %p122
      %p124 = pneg %p123
      // Predicated region
      $region9: #{tpu_custom_call.1} parent=5 // pred_check
        _
      $region10: #{tpu_custom_call.1} parent=5 // pred_check_branch
        %126 = sbr.rel (%p123) target = $region12
      $region11: #{tpu_custom_call.1} parent=5 // pred_region
        %s127 = ssub.s32 %s17, 1
      $region12: #{tpu_custom_call.1} parent=5 // pred_fallthru
        _
      %p128 = scmp.lt.s32.totalorder %s17, 2
      // Predicated region
      $region13: #{tpu_custom_call.1} parent=5 // pred_check
        %p129 = pneg %p128
      $region14: #{tpu_custom_call.1} parent=5 // pred_check_branch
        %131 = sbr.rel (%p129) target = $region16
      $region15: #{tpu_custom_call.1} parent=5 // pred_region
        // Predicated region
        $region17: #{tpu_custom_call.1} parent=15 // pred_check
          %p132 = pneg %p51
        $region18: #{tpu_custom_call.1} parent=15 // pred_check_branch
          %134 = sbr.rel (%p132) target = $region20
        $region19: #{tpu_custom_call.1} parent=15 // pred_region
          %s135 = sand.u32 %s41, 1
          %s136 = scalar_lea.sflag [#allocation3], %s135
          %s137 = sand.u32 %s41, 1
          %s138 = smul.addr %s137, 14
          %s139 = scalar_lea.vmem [#allocation2], %s138
          %141 = vsyncadd %s136, 0
          %s142 = smul.addr %s24, 7
          %s143 = sadd.s32 %s25, %s142
          %s144 = smul.addr %s143, 2
          %s145 = scalar_lea.hbm %s0, %s144
          %s146 = sshll.u32 %s145, 4
          %s147 = int_to_ptr.hbm [resolvable:$true] %s146
          %s148 = sshll.u32 %s139, 4
          %s149 = int_to_ptr.vmem [resolvable:$true] %s148
          %154 = dma.hbm_to_vmem [thread:$0]  %s147, 224, %s149, %s136, 32, 32, 2
        $region20: #{tpu_custom_call.1} parent=15 // pred_fallthru
          _
        // Predicated region
        $region21: #{tpu_custom_call.1} parent=15 // pred_check
          %p155 = pneg %p79
        $region22: #{tpu_custom_call.1} parent=15 // pred_check_branch
          %157 = sbr.rel (%p155) target = $region24
        $region23: #{tpu_custom_call.1} parent=15 // pred_region
          %s158 = sand.u32 %s69, 1
          %s159 = scalar_lea.sflag [#allocation6], %s158
          %s160 = sand.u32 %s69, 1
          %s161 = smul.addr %s160, 14
          %s162 = scalar_lea.vmem [#allocation5], %s161
          %164 = vsyncadd %s159, 0
          %s165 = smul.addr %s24, 7
          %s166 = sadd.s32 %s25, %s165
          %s167 = smul.addr %s166, 2
          %s168 = scalar_lea.hbm %s1, %s167
          %s169 = sshll.u32 %s168, 4
          %s170 = int_to_ptr.hbm [resolvable:$true] %s169
          %s171 = sshll.u32 %s162, 4
          %s172 = int_to_ptr.vmem [resolvable:$true] %s171
          %177 = dma.hbm_to_vmem [thread:$0]  %s170, 224, %s172, %s159, 32, 32, 2
        $region24: #{tpu_custom_call.1} parent=15 // pred_fallthru
          _
      $region16: #{tpu_custom_call.1} parent=5 // pred_fallthru
        _
      %p178 = scmp.le.s32.totalorder 1, %s17
      %p179 = scmp.lt.s32.totalorder %s17, 3
      %p180 = pnand %p178, %p179
      %p181 = pneg %p180
      // Predicated region
      $region25: #{tpu_custom_call.1} parent=5 // pred_check
        _
      $region26: #{tpu_custom_call.1} parent=5 // pred_check_branch
        %183 = sbr.rel (%p180) target = $region28
      $region27: #{tpu_custom_call.1} parent=5 // pred_region
        %s184 = ssub.s32 %s17, 1
        %s185 = sand.u32 %s44, 1
        %s186 = scalar_lea.sflag [#allocation3], %s185
        %s187 = sand.u32 %s44, 1
        %s188 = smul.addr %s187, 14
        %s189 = scalar_lea.vmem [#allocation2], %s188
        // Predicated region
        $region29: #{tpu_custom_call.1} parent=27 // pred_check
          %p190 = pneg %p57
        $region30: #{tpu_custom_call.1} parent=27 // pred_check_branch
          %192 = sbr.rel (%p190) target = $region32
        $region31: #{tpu_custom_call.1} parent=27 // pred_region
          %194 = dma.done %s186, 224
        $region32: #{tpu_custom_call.1} parent=27 // pred_fallthru
          _
        %s195 = sand.u32 %s72, 1
        %s196 = scalar_lea.sflag [#allocation6], %s195
        %s197 = sand.u32 %s72, 1
        %s198 = smul.addr %s197, 14
        %s199 = scalar_lea.vmem [#allocation5], %s198
        // Predicated region
        $region33: #{tpu_custom_call.1} parent=27 // pred_check
          %p200 = pneg %p85
        $region34: #{tpu_custom_call.1} parent=27 // pred_check_branch
          %202 = sbr.rel (%p200) target = $region36
        $region35: #{tpu_custom_call.1} parent=27 // pred_region
          %204 = dma.done %s196, 224
        $region36: #{tpu_custom_call.1} parent=27 // pred_fallthru
          _
        %s205 = sand.u32 %s44, 1
        %s206 = scalar_lea.sflag [#allocation3], %s205
        %s207 = sand.u32 %s44, 1
        %s208 = smul.addr %s207, 14
        %s209 = scalar_lea.vmem [#allocation2], %s208
        %p210 = pneg %p57
        %p211 = pneg %p54
        %s212 = sand.u32 %s72, 1
        %s213 = scalar_lea.sflag [#allocation6], %s212
        %s214 = sand.u32 %s72, 1
        %s215 = smul.addr %s214, 14
        %s216 = scalar_lea.vmem [#allocation5], %s215
        %p217 = pneg %p85
        %p218 = pneg %p82
        %p219 = pneg %p113
        %p220 = pneg %p110
        %s221 = sand.u32 %s100, 1
        %s222 = scalar_lea.sflag [#allocation4], %s221
        %s223 = sand.u32 %s100, 1
        %s224 = smul.addr %s223, 10
        %s225 = scalar_lea.vmem [#allocation7], %s224
        %v226 = vld [vmem:[%s199] sm:$0x3]
        %v227 = vld [vmem:[%s189] sm:$0x3]
        %v228 = vxor.u32 %v227, 2147483648
        %v229 = vmul.f32 %v228, 1.442695
        %v230 = vpow.pop %v229
        %v231 = vadd.f32 %v230, 1.0
        %v232 = vrcp.pop %v231
        %v233 = vmul.f32 %v231, %v232
        %v234 = vsub.f32 1.0, %v233
        %v235 = vmul.f32 %v232, %v234
        %v236 = vadd.f32 %v232, %v235
        %vm237 = vweird.f32 %v231
        %vm238 = vweird.f32 %v232
        %vm239 = vmor %vm237, %vm238
        %v240 = vsel %vm239, %v232, %v236
        %v241 = vand.u32 2147483647, %v231
        %vm242 = vcmp.eq.f32.partialorder %v241, 8.507059e+37
        %v243 = vand.u32 %v231, 2147483648
        %v244 = vor.u32 1.1754944e-38, %v243
        %v245 = vsel %vm242, %v244, %v240
        %v246 = vmul.f32 1.0, %v245
        %v247 = vmul.f32 %v246, %v226
        %v248 = vsub.f32 %v246, %v247
        %v249 = vsub.f32 0.0, %v246
        %v250 = vmul.f32 %v249, 1.442695
        %v251 = vpow.pop %v250
        %v252 = vadd.f32 %v251, 1.0
        %v253 = vlog2.pop %v252
        %v254 = vmul.f32 %v253, 0.6931472
        %v255 = vmul.f32 -0.5, %v251
        %v256 = vadd.f32 %v255, 1.0
        %v257 = vmul.f32 %v256, %v251
        %v258 = vand.u32 2147483647, %v251
        %vm259 = vcmp.lt.f32.partialorder %v258, 0.0004427343
        %v260 = vsel %vm259, %v257, %v254
        %v261 = vadd.f32 %v248, %v260
        %v262 = vcvt.f32.s32.to.zero.pseudo %v226
        %vm263 = vcmp.eq.s32.totalorder %v262, 0
        %v264 = vsel %vm263, 1, 0
        %v265 = vcvt.s32.f32 %v264
        %vm266 = vcmp.gt.f32.partialorder %v226, 0.01
        %v267 = vsel %vm266, %v226, 0.0
        %268 = vst [vmem:[%s225] sm:$0x3] %v261
        %s269 = scalar_lea.vmem %s225, 2 [#allocation7]
        %270 = vst [vmem:[%s269] sm:$0x3] %v265
        %s271 = scalar_lea.vmem %s189, 2 [#allocation2]
        %v272 = vld [vmem:[%s271] sm:$0x3]
        %s273 = scalar_lea.vmem %s199, 2 [#allocation5]
        %v274 = vld [vmem:[%s273] sm:$0x3]
        %v275 = vsub.f32 %v272, %v274
        %s276 = scalar_lea.vmem %s189, 4 [#allocation2]
        %v277 = vld [vmem:[%s276] sm:$0x3]
        %s278 = scalar_lea.vmem %s199, 4 [#allocation5]
        %v279 = vld [vmem:[%s278] sm:$0x3]
        %v280 = vsub.f32 %v277, %v279
        %v281 = vmul.f32 %v275, %v275
        %v282 = vmul.f32 %v280, %v280
        %v283 = vadd.f32 %v281, %v282
        %v284 = vmul.f32 %v283, %v267
        %s285 = scalar_lea.vmem %s225, 4 [#allocation7]
        %286 = vst [vmem:[%s285] sm:$0x3] %v284
        %s287 = scalar_lea.vmem %s189, 6 [#allocation2]
        %v288 = vld [vmem:[%s287] sm:$0x3]
        %s289 = scalar_lea.vmem %s199, 6 [#allocation5]
        %v290 = vld [vmem:[%s289] sm:$0x3]
        %v291 = vsub.f32 %v288, %v290
        %s292 = scalar_lea.vmem %s189, 8 [#allocation2]
        %v293 = vld [vmem:[%s292] sm:$0x3]
        %s294 = scalar_lea.vmem %s199, 8 [#allocation5]
        %v295 = vld [vmem:[%s294] sm:$0x3]
        %v296 = vsub.f32 %v293, %v295
        %v297 = vmul.f32 %v291, %v291
        %v298 = vmul.f32 %v296, %v296
        %v299 = vadd.f32 %v297, %v298
        %v300 = vmul.f32 %v299, %v267
        %s301 = scalar_lea.vmem %s225, 6 [#allocation7]
        %302 = vst [vmem:[%s301] sm:$0x3] %v300
        %s303 = scalar_lea.vmem %s189, 10 [#allocation2]
        %v304 = vld [vmem:[%s303] sm:$0x3]
        %s305 = scalar_lea.vmem %s199, 10 [#allocation5]
        %v306 = vld [vmem:[%s305] sm:$0x3]
        %v307 = vsub.f32 %v304, %v306
        %s308 = scalar_lea.vmem %s189, 12 [#allocation2]
        %v309 = vld [vmem:[%s308] sm:$0x3]
        %s310 = scalar_lea.vmem %s199, 12 [#allocation5]
        %v311 = vld [vmem:[%s310] sm:$0x3]
        %v312 = vsub.f32 %v309, %v311
        %v313 = vmul.f32 %v307, %v307
        %v314 = vmul.f32 %v312, %v312
        %v315 = vadd.f32 %v313, %v314
        %v316 = vmul.f32 %v315, %v267
        %s317 = scalar_lea.vmem %s225, 8 [#allocation7]
        %318 = vst [vmem:[%s317] sm:$0x3] %v316
        %s319 = sand.u32 %s100, 1
        %s320 = scalar_lea.sflag [#allocation4], %s319
        %s321 = sand.u32 %s100, 1
        %s322 = smul.addr %s321, 10
        %s323 = scalar_lea.vmem [#allocation7], %s322
        // Predicated region
        $region37: #{tpu_custom_call.1} parent=27 // pred_check
          %p324 = pneg %p110
        $region38: #{tpu_custom_call.1} parent=27 // pred_check_branch
          %326 = sbr.rel (%p324) target = $region40
        $region39: #{tpu_custom_call.1} parent=27 // pred_region
          %328 = vsyncadd %s320, 0
          %s329 = smul.addr %s27, 5
          %s330 = smul.addr %s26, 5
          %s331 = sadd.s32 %s329, %s330
          %s332 = smul.addr %s331, 2
          %s333 = scalar_lea.hbm %s2, %s332
          %s334 = sshll.u32 %s323, 4
          %s335 = int_to_ptr.vmem [resolvable:$true] %s334
          %s336 = sshll.u32 %s333, 4
          %s337 = int_to_ptr.hbm [resolvable:$true] %s336
          %342 = dma.vmem_to_hbm [thread:$0]  %s335, 160, %s337, %s320, 32, 32, 2
        $region40: #{tpu_custom_call.1} parent=27 // pred_fallthru
          _
      $region28: #{tpu_custom_call.1} parent=5 // pred_fallthru
        _
      %p343 = scmp.le.s32.totalorder 2, %s17
      // Predicated region
      $region41: #{tpu_custom_call.1} parent=5 // pred_check
        %p344 = pneg %p343
      $region42: #{tpu_custom_call.1} parent=5 // pred_check_branch
        %346 = sbr.rel (%p344) target = $region44
      $region43: #{tpu_custom_call.1} parent=5 // pred_region
        %s347 = ssub.s32 %s17, 2
        // Predicated region
        $region45: #{tpu_custom_call.1} parent=43 // pred_check
          %p348 = pneg %p116
        $region46: #{tpu_custom_call.1} parent=43 // pred_check_branch
          %350 = sbr.rel (%p348) target = $region48
        $region47: #{tpu_custom_call.1} parent=43 // pred_region
          %s351 = sand.u32 %s101, 1
          %s352 = scalar_lea.sflag [#allocation4], %s351
          %s353 = sand.u32 %s101, 1
          %s354 = smul.addr %s353, 10
          %s355 = scalar_lea.vmem [#allocation7], %s354
          %357 = dma.done %s352, 160
        $region48: #{tpu_custom_call.1} parent=43 // pred_fallthru
          _
      $region44: #{tpu_custom_call.1} parent=5 // pred_fallthru
        _
    $region6: #{tpu_custom_call.1} parent=1 // loop_footer
      %s21 = sadd.s32 1, %s17
    $region7: #{tpu_custom_call.1} parent=1 // loop_footer_branch
      %16 = sbr.rel target = $region3
    $region8: #{tpu_custom_call.1} parent=1 // loop_exit
      _
    %358 = vsyncpa [#allocation3], 1
    %s359 = scalar_lea.sflag [#allocation3], 1
    %360 = vsyncpa %s359, 1
    %361 = vsyncpa [#allocation6], 1
    %s362 = scalar_lea.sflag [#allocation6], 1
    %363 = vsyncpa %s362, 1
    %364 = vsyncpa [#allocation4], 1
    %s365 = scalar_lea.sflag [#allocation4], 1
    %366 = vsyncpa %s365, 1

</llo_original>
